<compile_context>
chip_gen: v7x
topology: tpu7x:2x2x1
jax: 0.10.0
libtpu: 0.0.40
codegen_flags: <defaults>
</compile_context>

<pallas_src>
import functools

import jax
import jax.numpy as jnp
from jax.experimental import pallas as pl
from jax.experimental.pallas import tpu as pltpu


def _round_up(n, m):
    return ((n + m - 1) // m) * m


def _cdiscriminator_kernel(xc_ref, w1_ref, b1_ref, w2_ref, b2_ref,
                           w3_ref, b3_ref, prob_ref, feat_ref):
    xc = xc_ref[...]                       # (tm, d_in) f32
    w1 = w1_ref[...]                       # (d_in, hid) f32
    d_in = xc.shape[1]

    # ----- linear1 + LeakyReLU(0.1): VPU broadcast multiply-adds -------------
    # d_in is tiny (x_depth + c_depth = 3), so skip the MXU entirely.
    # Bias is folded into the first MAC (no explicit broadcast_to copy).
    h1 = b1_ref[...] + xc[:, 0:1] * w1[0:1, :]
    for k in range(1, d_in):
        h1 = h1 + xc[:, k:k + 1] * w1[k:k + 1, :]
    h1 = jnp.maximum(h1, 0.1 * h1)

    # ----- linear2 + LeakyReLU(0.1) -> feat (lane-dense (tm, hid) store) -----
    # bf16 operands on the MXU, f32 accumulation.
    h2 = jnp.dot(h1.astype(jnp.bfloat16), w2_ref[...],
                 preferred_element_type=jnp.float32) + b2_ref[...]
    h2 = jnp.maximum(h2, 0.1 * h2)
    feat_ref[...] = h2.astype(feat_ref.dtype)

    # ----- linear3 + sigmoid --------------------------------------------------
    # VPU multiply + lane reduction (no degenerate N=1 MXU matmul, no transpose
    # of h2); prob is a small (tm, 1) store.
    logits = jnp.sum(h2 * w3_ref[...], axis=1, keepdims=True) + b3_ref[...]
    prob_ref[...] = jax.nn.sigmoid(logits).astype(prob_ref.dtype)


@functools.partial(jax.jit, static_argnames=("block_rows",))
def cdiscriminator_forward(x, c, params, *, block_rows=2048):
    """x: (B, x_depth), c: (B, c_depth). Returns (prob (B, 1), feat (B, n_hidden))."""
    w1, b1, w2, b2, w3, b3 = params
    b_in = x.shape[0]
    d_in = x.shape[1] + c.shape[1]
    hid = w2.shape[0]

    # Single input stream: pre-concatenate x and c (one lane-padded VMEM block
    # instead of two, one DMA stream instead of two narrow-row streams).
    xc = jnp.concatenate([x.astype(jnp.float32), c.astype(jnp.float32)], axis=1)

    # Batch tile: caller-supplied block_rows is rounded to a multiple of 128.
    # Small batches use a single 8-aligned tile; larger batches get a tile sized
    # so the grid has >= 2 steps (megacore sharding on v7x) capped at block_rows.
    block_rows = max(128, _round_up(block_rows, 128))
    if b_in <= 256:
        tm = _round_up(max(b_in, 1), 8)
    else:
        tm = min(block_rows, max(128, _round_up(pl.cdiv(b_in, 2), 128)))
    b_pad = _round_up(b_in, tm)
    if b_pad != b_in:
        xc = jnp.pad(xc, ((0, b_pad - b_in), (0, 0)))

    grid = (b_pad // tm,)
    const = lambda i: (0, 0)                        # params stay VMEM-resident

    in_specs = [
        pl.BlockSpec((tm, d_in), lambda i: (i, 0)),  # [x, c] concatenated
        pl.BlockSpec((d_in, hid), const),            # W1
        pl.BlockSpec((1, hid), const),               # b1
        pl.BlockSpec((hid, hid), const),             # W2 (bf16)
        pl.BlockSpec((1, hid), const),               # b2
        pl.BlockSpec((1, hid), const),               # W3 as a (1, hid) row
        pl.BlockSpec((1, 1), const),                 # b3
    ]
    out_specs = (
        pl.BlockSpec((tm, 1), lambda i: (i, 0)),     # prob
        pl.BlockSpec((tm, hid), lambda i: (i, 0)),   # feat (lane-dense)
    )
    out_shapes = (
        jax.ShapeDtypeStruct((b_pad, 1), jnp.float32),
        jax.ShapeDtypeStruct((b_pad, hid), jnp.float32),
    )

    cost = pl.CostEstimate(
        flops=2 * b_pad * (d_in * hid + hid * hid + hid),
        transcendentals=b_pad,
        bytes_accessed=(4 * b_pad * d_in                 # xc in
                        + 4 * b_pad * hid + 4 * b_pad     # feat + prob out
                        + 4 * d_in * hid + 2 * hid * hid  # W1 f32, W2 bf16
                        + 4 * (3 * hid + 1)),             # b1, b2, w3, b3
    )

    prob, feat = pl.pallas_call(
        _cdiscriminator_kernel,
        grid=grid,
        in_specs=in_specs,
        out_specs=out_specs,
        out_shape=out_shapes,
        compiler_params=pltpu.CompilerParams(
            dimension_semantics=("parallel",),
            vmem_limit_bytes=32 * 1024 * 1024),
        cost_estimate=cost,
    )(xc, w1, b1, w2, b2, w3, b3)

    return prob[:b_in], feat[:b_in]


def init_params(key, x_depth=2, c_depth=1, n_hidden=128):
    """nn.Linear-style init (uniform +-1/sqrt(fan_in)). Weights stored as
    (in_features, out_features); W2 shipped in bf16 (MXU operands); W3 as a row."""
    def linear(key, fan_in, fan_out):
        kw, kb = jax.random.split(key)
        bound = 1.0 / jnp.sqrt(float(fan_in))
        w = jax.random.uniform(kw, (fan_in, fan_out), jnp.float32, -bound, bound)
        b = jax.random.uniform(kb, (1, fan_out), jnp.float32, -bound, bound)
        return w, b

    k1, k2, k3 = jax.random.split(key, 3)
    w1, b1 = linear(k1, x_depth + c_depth, n_hidden)
    w2, b2 = linear(k2, n_hidden, n_hidden)
    w3, b3 = linear(k3, n_hidden, 1)
    return (w1, b1, w2.astype(jnp.bfloat16), b2, w3.T, b3.reshape(1, 1))


def _reference(x, c, params):
    """Pure-f32 reference matching the PyTorch module's math."""
    w1, b1, w2, b2, w3, b3 = params
    h1 = jnp.concatenate([x, c], axis=1) @ w1 + b1
    h1 = jnp.where(h1 > 0, h1, 0.1 * h1)
    h2 = h1 @ w2.astype(jnp.float32) + b2
    h2 = jnp.where(h2 > 0, h2, 0.1 * h2)
    prob = jax.nn.sigmoid(jnp.sum(h2 * w3, axis=1, keepdims=True) + b3)
    return prob, h2


if __name__ == "__main__":
    key = jax.random.PRNGKey(0)
    kx, kc, kp = jax.random.split(key, 3)

    x_depth, c_depth, n_hidden = 2, 1, 128   # module defaults
    params = init_params(kp, x_depth=x_depth, c_depth=c_depth, n_hidden=n_hidden)

    # Tolerance is loosened vs. the pure-f32 reference because the layer-2
    # matmul runs with bf16 operands (f32 accumulation).
    TOL = dict(atol=5e-2, rtol=5e-2)

    # Small single-tile case.
    B = 16
    x = jax.random.normal(kx, (B, x_depth), jnp.float32)
    c = jax.random.normal(kc, (B, c_depth), jnp.float32)
    prob, feat = cdiscriminator_forward(x, c, params)
    jax.block_until_ready((prob, feat))
    prob_ref, feat_ref = _reference(x, c, params)
    assert prob.shape == (B, 1) and feat.shape == (B, n_hidden)
    assert jnp.allclose(prob, prob_ref, **TOL)
    assert jnp.allclose(feat, feat_ref, **TOL)

    # Ragged multi-tile case (exercises the batch grid + padding path).
    B2 = 300
    x2 = jax.random.normal(kx, (B2, x_depth), jnp.float32)
    c2 = jax.random.normal(kc, (B2, c_depth), jnp.float32)
    prob2, feat2 = cdiscriminator_forward(x2, c2, params, block_rows=128)
    jax.block_until_ready((prob2, feat2))
    prob2_ref, feat2_ref = _reference(x2, c2, params)
    assert prob2.shape == (B2, 1) and feat2.shape == (B2, n_hidden)
    assert jnp.allclose(prob2, prob2_ref, **TOL)
    assert jnp.allclose(feat2, feat2_ref, **TOL)

    print("KERNEL_OK")
</pallas_src>

<mosaic_0001>
module attributes {stable_mosaic.version = 11 : i64} {
  func.func @_cdiscriminator_kernel(%arg0: i32, %arg1: memref<16x3xf32, #tpu.memory_space<vmem>>, %arg2: memref<3x128xf32, #tpu.memory_space<vmem>>, %arg3: memref<1x128xf32, #tpu.memory_space<vmem>>, %arg4: memref<128x128xbf16, #tpu.memory_space<vmem>>, %arg5: memref<1x128xf32, #tpu.memory_space<vmem>>, %arg6: memref<1x128xf32, #tpu.memory_space<vmem>>, %arg7: memref<1x1xf32, #tpu.memory_space<vmem>>, %arg8: memref<16x1xf32, #tpu.memory_space<vmem>>, %arg9: memref<16x128xf32, #tpu.memory_space<vmem>>) attributes {dimension_semantics = [#tpu.dimension_semantics<parallel>], iteration_bounds = array<i64: 1>, scalar_prefetch = 0 : i64, scratch_operands = 0 : i64, tpu.core_type = #tpu.core_type<tc>, window_params = [{transform_indices = @transform_0, window_bounds = array<i64: 16, 3>}, {pipeline_mode = #tpu.pipeline_mode<synchronous>, transform_indices = @transform_1, window_bounds = array<i64: 3, 128>}, {pipeline_mode = #tpu.pipeline_mode<synchronous>, transform_indices = @transform_2, window_bounds = array<i64: 1, 128>}, {pipeline_mode = #tpu.pipeline_mode<synchronous>, transform_indices = @transform_3, window_bounds = array<i64: 128, 128>}, {pipeline_mode = #tpu.pipeline_mode<synchronous>, transform_indices = @transform_4, window_bounds = array<i64: 1, 128>}, {pipeline_mode = #tpu.pipeline_mode<synchronous>, transform_indices = @transform_5, window_bounds = array<i64: 1, 128>}, {pipeline_mode = #tpu.pipeline_mode<synchronous>, transform_indices = @transform_6, window_bounds = array<i64: 1, 1>}, {transform_indices = @transform_7, window_bounds = array<i64: 16, 1>}, {transform_indices = @transform_8, window_bounds = array<i64: 16, 128>}]} {
    %c0 = arith.constant 0 : index
    %c0_0 = arith.constant 0 : index
    %0 = vector.load %arg1[%c0, %c0_0] : memref<16x3xf32, #tpu.memory_space<vmem>>, vector<16x3xf32>
    %c0_1 = arith.constant 0 : index
    %c0_2 = arith.constant 0 : index
    %1 = vector.load %arg2[%c0_1, %c0_2] : memref<3x128xf32, #tpu.memory_space<vmem>>, vector<3x128xf32>
    %c0_3 = arith.constant 0 : index
    %c0_4 = arith.constant 0 : index
    %2 = vector.load %arg3[%c0_3, %c0_4] : memref<1x128xf32, #tpu.memory_space<vmem>>, vector<1x128xf32>
    %3 = vector.extract_strided_slice %0 {offsets = [0, 0], sizes = [16, 1], strides = [1, 1]} : vector<16x3xf32> to vector<16x1xf32>
    %4 = vector.extract_strided_slice %1 {offsets = [0, 0], sizes = [1, 128], strides = [1, 1]} : vector<3x128xf32> to vector<1x128xf32>
    %5 = vector.broadcast %3 : vector<16x1xf32> to vector<16x128xf32>
    %6 = vector.broadcast %4 : vector<1x128xf32> to vector<16x128xf32>
    %7 = arith.mulf %5, %6 : vector<16x128xf32>
    %8 = vector.broadcast %2 : vector<1x128xf32> to vector<16x128xf32>
    %9 = arith.addf %8, %7 : vector<16x128xf32>
    %10 = vector.extract_strided_slice %0 {offsets = [0, 1], sizes = [16, 1], strides = [1, 1]} : vector<16x3xf32> to vector<16x1xf32>
    %11 = vector.extract_strided_slice %1 {offsets = [1, 0], sizes = [1, 128], strides = [1, 1]} : vector<3x128xf32> to vector<1x128xf32>
    %12 = vector.broadcast %10 : vector<16x1xf32> to vector<16x128xf32>
    %13 = vector.broadcast %11 : vector<1x128xf32> to vector<16x128xf32>
    %14 = arith.mulf %12, %13 : vector<16x128xf32>
    %15 = arith.addf %9, %14 : vector<16x128xf32>
    %16 = vector.extract_strided_slice %0 {offsets = [0, 2], sizes = [16, 1], strides = [1, 1]} : vector<16x3xf32> to vector<16x1xf32>
    %17 = vector.extract_strided_slice %1 {offsets = [2, 0], sizes = [1, 128], strides = [1, 1]} : vector<3x128xf32> to vector<1x128xf32>
    %18 = vector.broadcast %16 : vector<16x1xf32> to vector<16x128xf32>
    %19 = vector.broadcast %17 : vector<1x128xf32> to vector<16x128xf32>
    %20 = arith.mulf %18, %19 : vector<16x128xf32>
    %21 = arith.addf %15, %20 : vector<16x128xf32>
    %cst = arith.constant 1.000000e-01 : f32
    %22 = vector.broadcast %cst : f32 to vector<16x128xf32>
    %23 = arith.mulf %22, %21 : vector<16x128xf32>
    %24 = arith.maximumf %21, %23 : vector<16x128xf32>
    %25 = arith.truncf %24 : vector<16x128xf32> to vector<16x128xbf16>
    %c0_5 = arith.constant 0 : index
    %c0_6 = arith.constant 0 : index
    %26 = vector.load %arg4[%c0_5, %c0_6] : memref<128x128xbf16, #tpu.memory_space<vmem>>, vector<128x128xbf16>
    %cst_7 = arith.constant dense<0.000000e+00> : vector<16x128xf32>
    %27 = tpu.matmul %25, %26, %cst_7 {dimension_numbers = #tpu.dot_dimension_numbers<[1], [0], [0], [1], [0, 0, 1, 1], [], []>} : vector<16x128xbf16>, vector<128x128xbf16>, vector<16x128xf32> -> vector<16x128xf32>
    %c0_8 = arith.constant 0 : index
    %c0_9 = arith.constant 0 : index
    %28 = vector.load %arg5[%c0_8, %c0_9] : memref<1x128xf32, #tpu.memory_space<vmem>>, vector<1x128xf32>
    %29 = vector.broadcast %28 : vector<1x128xf32> to vector<16x128xf32>
    %30 = arith.addf %27, %29 : vector<16x128xf32>
    %cst_10 = arith.constant 1.000000e-01 : f32
    %31 = vector.broadcast %cst_10 : f32 to vector<16x128xf32>
    %32 = arith.mulf %31, %30 : vector<16x128xf32>
    %33 = arith.maximumf %30, %32 : vector<16x128xf32>
    %c0_11 = arith.constant 0 : index
    %c0_12 = arith.constant 0 : index
    %34 = vector.load %arg9[%c0_11, %c0_12] : memref<16x128xf32, #tpu.memory_space<vmem>>, vector<16x128xf32>
    tpu.vector_store %arg9[%c0_11, %c0_12], %33 {strides = array<i32>} : memref<16x128xf32, #tpu.memory_space<vmem>>, vector<16x128xf32>,
    %c0_13 = arith.constant 0 : index
    %c0_14 = arith.constant 0 : index
    %35 = vector.load %arg6[%c0_13, %c0_14] : memref<1x128xf32, #tpu.memory_space<vmem>>, vector<1x128xf32>
    %36 = vector.broadcast %35 : vector<1x128xf32> to vector<16x128xf32>
    %37 = arith.mulf %33, %36 : vector<16x128xf32>
    %cst_15 = arith.constant dense<0.000000e+00> : vector<16xf32>
    %38 = vector.multi_reduction <add>, %37, %cst_15 [1] : vector<16x128xf32> to vector<16xf32>
    %39 = vector.shape_cast %38 : vector<16xf32> to vector<16x1xf32>
    %c0_16 = arith.constant 0 : index
    %c0_17 = arith.constant 0 : index
    %40 = vector.load %arg7[%c0_16, %c0_17] : memref<1x1xf32, #tpu.memory_space<vmem>>, vector<1x1xf32>
    %41 = vector.broadcast %40 : vector<1x1xf32> to vector<16x1xf32>
    %42 = arith.addf %39, %41 : vector<16x1xf32>
    %43 = arith.negf %42 : vector<16x1xf32>
    %44 = math.exp %43 : vector<16x1xf32>
    %cst_18 = arith.constant 1.000000e+00 : f32
    %45 = vector.broadcast %cst_18 : f32 to vector<16x1xf32>
    %46 = arith.addf %45, %44 : vector<16x1xf32>
    %47 = arith.divf %45, %46 : vector<16x1xf32>
    %c0_19 = arith.constant 0 : index
    %c0_20 = arith.constant 0 : index
    %48 = vector.load %arg8[%c0_19, %c0_20] : memref<16x1xf32, #tpu.memory_space<vmem>>, vector<16x1xf32>
    tpu.vector_store %arg8[%c0_19, %c0_20], %47 {strides = array<i32>} : memref<16x1xf32, #tpu.memory_space<vmem>>, vector<16x1xf32>,
    return
  }
  func.func @transform_0(%arg0: i32) -> (i32, i32) {
    %c0_i32 = arith.constant 0 : i32
    %c0_i32_0 = arith.constant 0 : i32
    return %arg0, %c0_i32 : i32, i32
  }
  func.func @transform_1(%arg0: i32) -> (i32, i32) {
    %c0_i32 = arith.constant 0 : i32
    %c0_i32_0 = arith.constant 0 : i32
    %c0_i32_1 = arith.constant 0 : i32
    return %c0_i32, %c0_i32_0 : i32, i32
  }
  func.func @transform_2(%arg0: i32) -> (i32, i32) {
    %c0_i32 = arith.constant 0 : i32
    %c0_i32_0 = arith.constant 0 : i32
    %c0_i32_1 = arith.constant 0 : i32
    return %c0_i32, %c0_i32_0 : i32, i32
  }
  func.func @transform_3(%arg0: i32) -> (i32, i32) {
    %c0_i32 = arith.constant 0 : i32
    %c0_i32_0 = arith.constant 0 : i32
    %c0_i32_1 = arith.constant 0 : i32
    return %c0_i32, %c0_i32_0 : i32, i32
  }
  func.func @transform_4(%arg0: i32) -> (i32, i32) {
    %c0_i32 = arith.constant 0 : i32
    %c0_i32_0 = arith.constant 0 : i32
    %c0_i32_1 = arith.constant 0 : i32
    return %c0_i32, %c0_i32_0 : i32, i32
  }
  func.func @transform_5(%arg0: i32) -> (i32, i32) {
    %c0_i32 = arith.constant 0 : i32
    %c0_i32_0 = arith.constant 0 : i32
    %c0_i32_1 = arith.constant 0 : i32
    return %c0_i32, %c0_i32_0 : i32, i32
  }
  func.func @transform_6(%arg0: i32) -> (i32, i32) {
    %c0_i32 = arith.constant 0 : i32
    %c0_i32_0 = arith.constant 0 : i32
    %c0_i32_1 = arith.constant 0 : i32
    return %c0_i32, %c0_i32_0 : i32, i32
  }
  func.func @transform_7(%arg0: i32) -> (i32, i32) {
    %c0_i32 = arith.constant 0 : i32
    %c0_i32_0 = arith.constant 0 : i32
    return %arg0, %c0_i32 : i32, i32
  }
  func.func @transform_8(%arg0: i32) -> (i32, i32) {
    %c0_i32 = arith.constant 0 : i32
    %c0_i32_0 = arith.constant 0 : i32
    return %arg0, %c0_i32 : i32, i32
  }
}

</mosaic_0001>

<llo_original>
// kernel: cdiscriminator_forward.1
$region0: #{cdiscriminator_forward.1}
  #allocation0 [shape = 'u32[]', space=smem, size = 0x4, offset = 0x4, fixed_abs, tag = 'smem constant byte address 0x4 - core index']
  #allocation1 [shape = 'u32[144,128]{1,0:T(1,128)}', space=vmem, size = 0x12000, scoped, tag = 'internal scratch']
  #allocation2 [shape = 'f32[1,1]{1,0:T(1,128)S(1)}', space=vmem, size = 0x200, scoped, tag = 'scoped memory for cdiscriminator_forward.1']
  %s0 = inlined_call_operand.vmem [shape: f32[16,3], index: 0, kind: input, shape index: {}]
  %s1 = inlined_call_operand.vmem [shape: f32[3,128], index: 1, kind: input, shape index: {}]
  %s2 = inlined_call_operand.vmem [shape: f32[1,128], index: 2, kind: input, shape index: {}]
  %s3 = inlined_call_operand.hbm [shape: bf16[128,128], index: 3, kind: input, shape index: {}]
  %s4 = inlined_call_operand.vmem [shape: f32[1,128], index: 4, kind: input, shape index: {}]
  %s5 = inlined_call_operand.vmem [shape: f32[1,128], index: 5, kind: input, shape index: {}]
  %s6 = inlined_call_operand.<no memory space> [shape: f32[1,1], index: 6, kind: input, shape index: {}]
  %s7 = inlined_call_operand.vmem [shape: f32[16,1], index: 7, kind: output, shape index: {0}]
  %s8 = inlined_call_operand.hbm [shape: f32[16,128], index: 8, kind: output, shape index: {1}]
  %9 = xla_tuple %s7, %s8
  %s10 = sld [smem:[#allocation0]]
  $region50: #{cdiscriminator_forward.1} parent=0
    _
  %s12 = ssub.s32 1, %s10
  %s13 = scalar_select 0, %s12, %s10
  %v14 = vstv %s6
  %15 = vst [vmem:[#allocation2] sm:$0x1] %v14
  $region1: #{cdiscriminator_forward.1} parent=0
    #allocation3 [shape = 'u8[32768]{0}', space=vmem, size = 0x8000, scoped, tag = 'input window, operand 3, single buffered']
    #allocation4 [shape = 's32[1]{0}', space=sflag, size = 0x4, scoped, tag = 'scoped memory for cdiscriminator_forward.1']
    #allocation5 [shape = 's32[1]{0}', space=sflag, size = 0x4, scoped, tag = 'scoped memory for cdiscriminator_forward.1']
    #allocation6 [shape = 'u8[8192]{0}', space=vmem, size = 0x2000, scoped, tag = 'output window, operand 1, single buffered']
    %16 = vsyncpa [#allocation4], 0
    %17 = vsyncpa [#allocation5], 0
    // Predicated region
    $region2: #{cdiscriminator_forward.1} parent=1 // pred_check
      _
    $region3: #{cdiscriminator_forward.1} parent=1 // pred_check_branch
      %19 = sbr.rel (0) target = $region5
    $region4: #{cdiscriminator_forward.1} parent=1 // pred_region
      _
    $region5: #{cdiscriminator_forward.1} parent=1 // pred_fallthru
      _
    // Predicated region
    $region6: #{cdiscriminator_forward.1} parent=1 // pred_check
      _
    $region7: #{cdiscriminator_forward.1} parent=1 // pred_check_branch
      %21 = sbr.rel (0) target = $region9
    $region8: #{cdiscriminator_forward.1} parent=1 // pred_region
      _
    $region9: #{cdiscriminator_forward.1} parent=1 // pred_fallthru
      _
    // Predicated region
    $region10: #{cdiscriminator_forward.1} parent=1 // pred_check
      _
    $region11: #{cdiscriminator_forward.1} parent=1 // pred_check_branch
      %23 = sbr.rel (0) target = $region13
    $region12: #{cdiscriminator_forward.1} parent=1 // pred_region
      _
    $region13: #{cdiscriminator_forward.1} parent=1 // pred_fallthru
      _
    // Predicated region
    $region14: #{cdiscriminator_forward.1} parent=1 // pred_check
      _
    $region15: #{cdiscriminator_forward.1} parent=1 // pred_check_branch
      %25 = sbr.rel (0) target = $region17
    $region16: #{cdiscriminator_forward.1} parent=1 // pred_region
      %s27 = ssub.s32 1024, 1024
      %28 = vsyncadd [#allocation4], %s27
      %s29 = sshll.u32 [#allocation3], 4
      %s30 = int_to_ptr.vmem [resolvable:$true] %s29
      %35 = dma.hbm_to_vmem [thread:$0]  %s3, 1024, %s30, [#allocation4], 64, 64, 4
    $region17: #{cdiscriminator_forward.1} parent=1 // pred_fallthru
      _
    // Predicated region
    $region18: #{cdiscriminator_forward.1} parent=1 // pred_check
      _
    $region19: #{cdiscriminator_forward.1} parent=1 // pred_check_branch
      %37 = sbr.rel (0) target = $region21
    $region20: #{cdiscriminator_forward.1} parent=1 // pred_region
      _
    $region21: #{cdiscriminator_forward.1} parent=1 // pred_fallthru
      _
    // Predicated region
    $region22: #{cdiscriminator_forward.1} parent=1 // pred_check
      _
    $region23: #{cdiscriminator_forward.1} parent=1 // pred_check_branch
      %39 = sbr.rel (0) target = $region25
    $region24: #{cdiscriminator_forward.1} parent=1 // pred_region
      _
    $region25: #{cdiscriminator_forward.1} parent=1 // pred_fallthru
      _
    // Predicated region
    $region26: #{cdiscriminator_forward.1} parent=1 // pred_check
      _
    $region27: #{cdiscriminator_forward.1} parent=1 // pred_check_branch
      %41 = sbr.rel (0) target = $region29
    $region28: #{cdiscriminator_forward.1} parent=1 // pred_region
      _
    $region29: #{cdiscriminator_forward.1} parent=1 // pred_fallthru
      _
    // Predicated region
    $region30: #{cdiscriminator_forward.1} parent=1 // pred_check
      _
    $region31: #{cdiscriminator_forward.1} parent=1 // pred_check_branch
      %43 = sbr.rel (0) target = $region33
    $region32: #{cdiscriminator_forward.1} parent=1 // pred_region
      %44 = dma.done [#allocation4], 1024
    $region33: #{cdiscriminator_forward.1} parent=1 // pred_fallthru
      _
    %v46 = vld [vmem:[%s0] sm:$0xff]
    %v47 = vld [vmem:[%s0 + $0x8] sm:$0xff]
    %v48 = vld [vmem:[%s1] sm:$0x7]
    %v49 = vld [vmem:[%s2] sm:$0x1]
    %51 = vset.pattern.permute.xlu0 0
    %52 = vperm.xlu0 %51, %v46
    %v53 = vpop.permute.xlu0 %52
    %56 = vset.pattern.permute.xlu0 0
    %57 = vperm.xlu0 %56, %v47
    %v58 = vpop.permute.xlu0 %57
    %v60 = vlaneseq
    %v61 = vshrl.u32 %v60, 7
    %v62 = vsub.s32 0, %v61
    %v63 = vrot.slane %v48, %v62
    %v64 = vmul.f32 %v53, %v63
    %v65 = vmul.f32 %v58, %v63
    %v67 = vlaneseq
    %v68 = vshrl.u32 %v67, 7
    %v69 = vsub.s32 0, %v68
    %v70 = vrot.slane %v49, %v69
    %v72 = vadd.f32 %v70, %v64
    %v73 = vadd.f32 %v70, %v65
    %74 = vset.pattern.permute.xlu0 1
    %75 = vperm.xlu0 %74, %v46
    %v76 = vpop.permute.xlu0 %75
    %78 = vset.pattern.permute.xlu0 1
    %79 = vperm.xlu0 %78, %v47
    %v80 = vpop.permute.xlu0 %79
    %v82 = vlaneseq
    %v83 = vshrl.u32 %v82, 7
    %v84 = vsub.s32 1, %v83
    %v85 = vrot.slane %v48, %v84
    %v86 = vmul.f32 %v76, %v85
    %v87 = vmul.f32 %v80, %v85
    %v88 = vadd.f32 %v72, %v86
    %v89 = vadd.f32 %v73, %v87
    %90 = vset.pattern.permute.xlu0 2
    %91 = vperm.xlu0 %90, %v46
    %v92 = vpop.permute.xlu0 %91
    %94 = vset.pattern.permute.xlu0 2
    %95 = vperm.xlu0 %94, %v47
    %v96 = vpop.permute.xlu0 %95
    %v98 = vlaneseq
    %v99 = vshrl.u32 %v98, 7
    %v100 = vsub.s32 2, %v99
    %v101 = vrot.slane %v48, %v100
    %v102 = vmul.f32 %v92, %v101
    %v103 = vmul.f32 %v96, %v101
    %v104 = vadd.f32 %v88, %v102
    %v105 = vadd.f32 %v89, %v103
    %v106 = vmul.f32 %v104, 0.1
    %v107 = vmul.f32 %v105, 0.1
    %v108 = vmax.f32 %v104, %v106
    %v109 = vmax.f32 %v105, %v107
    %v110 = vpack.c.bf16 %v109, %v108
    %v111 = vld [vmem:[#allocation3] sm:$0xf]
    %v112 = vld [vmem:[#allocation3 + $0x4] sm:$0xf]
    %v113 = vld [vmem:[#allocation3 + $0x8] sm:$0xf]
    %v114 = vld [vmem:[#allocation3 + $0xc] sm:$0xf]
    %v115 = vld [vmem:[#allocation3 + $0x10] sm:$0xf]
    %v116 = vld [vmem:[#allocation3 + $0x14] sm:$0xf]
    %v117 = vld [vmem:[#allocation3 + $0x18] sm:$0xf]
    %v118 = vld [vmem:[#allocation3 + $0x1c] sm:$0xf]
    %v119 = vld [vmem:[#allocation3 + $0x20] sm:$0xf]
    %v120 = vld [vmem:[#allocation3 + $0x24] sm:$0xf]
    %v121 = vld [vmem:[#allocation3 + $0x28] sm:$0xf]
    %v122 = vld [vmem:[#allocation3 + $0x2c] sm:$0xf]
    %v123 = vld [vmem:[#allocation3 + $0x30] sm:$0xf]
    %v124 = vld [vmem:[#allocation3 + $0x34] sm:$0xf]
    %v125 = vld [vmem:[#allocation3 + $0x38] sm:$0xf]
    %v126 = vld [vmem:[#allocation3 + $0x3c] sm:$0xf]
    %v127 = vld [vmem:[%s4] sm:$0x1]
    %v129 = vlaneseq
    %v130 = vshrl.u32 %v129, 7
    %v131 = vsub.s32 0, %v130
    %v132 = vrot.slane %v127, %v131
    %v150 = vunpack.c.l.b16 %v111
    %v151 = vunpack.c.l.b16 %v112
    %v152 = vunpack.c.l.b16 %v113
    %v153 = vunpack.c.l.b16 %v114
    %v154 = vunpack.c.l.b16 %v115
    %v155 = vunpack.c.l.b16 %v116
    %v156 = vunpack.c.l.b16 %v117
    %v157 = vunpack.c.l.b16 %v118
    %v158 = vunpack.c.l.b16 %v119
    %v159 = vunpack.c.l.b16 %v120
    %v160 = vunpack.c.l.b16 %v121
    %v161 = vunpack.c.l.b16 %v122
    %v162 = vunpack.c.l.b16 %v123
    %v163 = vunpack.c.l.b16 %v124
    %v164 = vunpack.c.l.b16 %v125
    %v165 = vunpack.c.l.b16 %v126
    %v166 = vpack.c.b16 %v151, %v150
    %v167 = vpack.c.b16 %v153, %v152
    %v168 = vpack.c.b16 %v155, %v154
    %v169 = vpack.c.b16 %v157, %v156
    %v170 = vpack.c.b16 %v159, %v158
    %v171 = vpack.c.b16 %v161, %v160
    %v172 = vpack.c.b16 %v163, %v162
    %v173 = vpack.c.b16 %v165, %v164
    %182 = vmatprep.subr.bf16.mxu0 0
    %183 = vmatpush1.bf16.msra.mxu0 %v166
    %184 = vmatprep.subr.bf16.mxu0 0
    %185 = vmatpush1.bf16.msra.mxu0 %v167
    %186 = vmatprep.subr.bf16.mxu0 0
    %187 = vmatpush1.bf16.msra.mxu0 %v168
    %188 = vmatprep.subr.bf16.mxu0 0
    %189 = vmatpush1.bf16.msra.mxu0 %v169
    %190 = vmatprep.subr.bf16.mxu0 0
    %191 = vmatpush1.bf16.msra.mxu0 %v170
    %192 = vmatprep.subr.bf16.mxu0 0
    %193 = vmatpush1.bf16.msra.mxu0 %v171
    %194 = vmatprep.subr.bf16.mxu0 0
    %195 = vmatpush1.bf16.msra.mxu0 %v172
    %196 = vmatprep.subr.bf16.mxu0 0
    %197 = vmatpush1.bf16.msra.mxu0 %v173
    %198 = vmatprep.subr.bf16.mxu0 0
    %199 = vmatpush1.bf16.msra.mxu0 0
    %200 = vmatprep.subr.bf16.mxu0 0
    %201 = vmatpush1.bf16.msra.mxu0 0
    %202 = vmatprep.subr.bf16.mxu0 0
    %203 = vmatpush1.bf16.msra.mxu0 0
    %204 = vmatprep.subr.bf16.mxu0 0
    %205 = vmatpush1.bf16.msra.mxu0 0
    %206 = vmatprep.subr.bf16.mxu0 0
    %207 = vmatpush1.bf16.msra.mxu0 0
    %208 = vmatprep.subr.bf16.mxu0 0
    %209 = vmatpush1.bf16.msra.mxu0 0
    %210 = vmatprep.subr.bf16.mxu0 0
    %211 = vmatpush1.bf16.msra.mxu0 0
    %212 = vmatprep.subr.bf16.mxu0 0
    %213 = vmatpush1.bf16.msra.mxu0 0
    %214 = vmatprep.mubr.bf16.mxu0 0
    %215 = vmatmul.mubr.bf16.gmra.mrb[0].mxu0 %v110
    %v216 = vpop.f32.mrb[0].mxu0
    %v217 = vadd.f32 %v132, %v216
    %v218 = vpop.f32.mrb[0].mxu0
    %v219 = vpop.f32.mrb[0].mxu0
    %v220 = vadd.f32 %v132, %v219
    %v221 = vpop.f32.mrb[0].mxu0
    %222 = vdwg.mxu0
    %v223 = vmul.f32 %v217, 0.1
    %v224 = vmul.f32 %v220, 0.1
    %v225 = vmax.f32 %v217, %v223
    %v226 = vmax.f32 %v220, %v224
    %227 = vst [vmem:[#allocation6] sm:$0xff] %v225
    %228 = vst [vmem:[#allocation6 + $0x8] sm:$0xff] %v226
    %v229 = vld [vmem:[%s5] sm:$0x1]
    %v231 = vlaneseq
    %v232 = vshrl.u32 %v231, 7
    %v233 = vsub.s32 0, %v232
    %v234 = vrot.slane %v229, %v233
    %v236 = vmul.f32 %v225, %v234
    %v237 = vmul.f32 %v226, %v234
    %238 = vadd.xlane.f32.xlu0 %v236
    %v239 = vpop.xlane.xlu0 %238
    %240 = vadd.xlane.f32.xlu0 %v237
    %v241 = vpop.xlane.xlu0 %240
    %v242 = vld [vmem:[#allocation2] sm:$0x1]
    %v244 = vlaneseq
    %v245 = vshrl.u32 %v244, 7
    %v246 = vsub.s32 0, %v245
    %v247 = vrot.slane %v242, %v246
    %v249 = vadd.f32 %v239, %v247
    %v250 = vadd.f32 %v241, %v247
    %v251 = vxor.u32 %v249, 2147483648
    %v252 = vxor.u32 %v250, 2147483648
    %v253 = vmul.f32 %v251, 1.442695
    %v254 = vpow.pop %v253
    %v255 = vmul.f32 %v252, 1.442695
    %v256 = vpow.pop %v255
    %v257 = vadd.f32 %v254, 1.0
    %v258 = vadd.f32 %v256, 1.0
    %v259 = vrcp.pop %v257
    %v260 = vmul.f32 1.0, %v259
    %v261 = vrcp.pop %v258
    %v262 = vmul.f32 1.0, %v261
    %vm263 = vcmask 7168
    %264 = vst.msk [vmem:[%s7] sm:$0xff] %vm263, %v260
    %265 = vst.msk [vmem:[%s7 + $0x8] sm:$0xff] %vm263, %v262
    // Predicated region
    $region34: #{cdiscriminator_forward.1} parent=1 // pred_check
      _
    $region35: #{cdiscriminator_forward.1} parent=1 // pred_check_branch
      %267 = sbr.rel (0) target = $region37
    $region36: #{cdiscriminator_forward.1} parent=1 // pred_region
      _
    $region37: #{cdiscriminator_forward.1} parent=1 // pred_fallthru
      _
    // Predicated region
    $region38: #{cdiscriminator_forward.1} parent=1 // pred_check
      _
    $region39: #{cdiscriminator_forward.1} parent=1 // pred_check_branch
      %269 = sbr.rel (0) target = $region41
    $region40: #{cdiscriminator_forward.1} parent=1 // pred_region
      %s271 = ssub.s32 256, 256
      %272 = vsyncadd [#allocation5], %s271
      %s273 = sshll.u32 [#allocation6], 4
      %s274 = int_to_ptr.vmem [resolvable:$true] %s273
      %279 = dma.vmem_to_hbm [thread:$0]  %s274, 256, %s8, [#allocation5], 128, 128, 8
    $region41: #{cdiscriminator_forward.1} parent=1 // pred_fallthru
      _
    // Predicated region
    $region42: #{cdiscriminator_forward.1} parent=1 // pred_check
      _
    $region43: #{cdiscriminator_forward.1} parent=1 // pred_check_branch
      %281 = sbr.rel (0) target = $region45
    $region44: #{cdiscriminator_forward.1} parent=1 // pred_region
      _
    $region45: #{cdiscriminator_forward.1} parent=1 // pred_fallthru
      _
    // Predicated region
    $region46: #{cdiscriminator_forward.1} parent=1 // pred_check
      _
    $region47: #{cdiscriminator_forward.1} parent=1 // pred_check_branch
      %283 = sbr.rel (0) target = $region49
    $region48: #{cdiscriminator_forward.1} parent=1 // pred_region
      %284 = dma.done [#allocation5], 256
    $region49: #{cdiscriminator_forward.1} parent=1 // pred_fallthru
      _
    %285 = vsyncpa [#allocation4], 1
    %286 = vsyncpa [#allocation5], 1

</llo_original>
